<compile_context>
chip_gen: v6e
topology: v6e:2x2x1
jax: 0.10.0
libtpu: 0.0.40
codegen_flags: <defaults>
</compile_context>

<pallas_src>
import functools

import jax
import jax.numpy as jnp
import numpy as np
from jax.experimental import pallas as pl
from jax.experimental.pallas import tpu as pltpu


def mlp_kernel(x_ref, w1_ref, b1_ref, w2_ref, b2_ref, w3_ref, b3_ref, o_ref):
    # In-kernel cast of x to the matmul operand dtype (bf16 by default); accumulation
    # and the bias-add + tanh epilogue stay in f32.
    x = x_ref[...].astype(w1_ref.dtype)
    # Layer 1: Linear(obs, hid) -> Tanh
    h1 = jnp.tanh(
        jnp.dot(x, w1_ref[...], preferred_element_type=jnp.float32) + b1_ref[...]
    )
    # Layer 2: Linear(hid, hid) -> Tanh
    h2 = jnp.tanh(
        jnp.dot(h1.astype(w2_ref.dtype), w2_ref[...], preferred_element_type=jnp.float32)
        + b2_ref[...]
    )
    # Layer 3: Linear(hid, act) -> Tanh (unpadded store; act equals the full array dim)
    o_ref[...] = jnp.tanh(
        jnp.dot(h2.astype(w3_ref.dtype), w3_ref[...], preferred_element_type=jnp.float32)
        + b3_ref[...]
    ).astype(o_ref.dtype)


def _round_up(x, m):
    return ((x + m - 1) // m) * m


@functools.partial(jax.jit, static_argnames=("block_b",))
def net_forward(x, params, *, block_b=4096):
    """Pallas forward for Net.mu: 3x (Linear + Tanh).

    x:      [B, obs] float32
    params: kernel-ready dict from prepare_params():
            w1[obs,hid], w2[hid,hid], w3[hid,act] in bf16 (or f32), pre-transposed vs.
            PyTorch's [out,in]; b1/b2/b3 as [1, out] float32.
    Returns [B, act] float32.
    """
    w1, b1 = params["w1"], params["b1"]
    w2, b2 = params["w2"], params["b2"]
    w3, b3 = params["w3"], params["b3"]

    B, obs = x.shape
    hid = w1.shape[1]
    act = w3.shape[1]

    # Batch tiling: aim for >= 2 grid steps (multiple of 8 rows each) so v7x's two
    # TensorCores both get work; cap the block at block_b rows. Tiny batches (<= 8 rows)
    # use a single full-batch block (block dim == array dim satisfies the layout rule).
    if B <= 8:
        tb = B
    else:
        tb = min(block_b, _round_up(pl.cdiv(B, 2), 8))
    bp = pl.cdiv(B, tb) * tb
    xin = x if bp == B else jnp.pad(x, ((0, bp - B), (0, 0)))  # rare ragged-batch path
    grid = (bp // tb,)

    def resident(shape):  # weights/biases: same block every step -> stay in VMEM
        return pl.BlockSpec(shape, lambda i: (0, 0))

    w_item = jnp.dtype(w1.dtype).itemsize
    flops = 2 * bp * (obs * hid + hid * hid + hid * act)
    transcendentals = bp * (2 * hid + act)
    bytes_accessed = (
        bp * obs * 4                                        # x (f32)
        + (obs * hid + hid * hid + hid * act) * w_item      # weights
        + (2 * hid + act) * 4                               # biases (f32)
        + bp * act * 4                                      # output (f32, unpadded)
    )

    out = pl.pallas_call(
        mlp_kernel,
        out_shape=jax.ShapeDtypeStruct((bp, act), jnp.float32),
        grid=grid,
        in_specs=[
            pl.BlockSpec((tb, obs), lambda i: (i, 0)),
            resident(w1.shape), resident(b1.shape),
            resident(w2.shape), resident(b2.shape),
            resident(w3.shape), resident(b3.shape),
        ],
        out_specs=pl.BlockSpec((tb, act), lambda i: (i, 0)),
        compiler_params=pltpu.CompilerParams(
            dimension_semantics=("parallel",),  # batch grid splits across TCs on v7x
        ),
        cost_estimate=pl.CostEstimate(
            flops=flops,
            transcendentals=transcendentals,
            bytes_accessed=bytes_accessed,
        ),
    )(xin, w1, b1, w2, b2, w3, b3)

    return out if bp == B else out[:B]


def init_params(key, obs_size, act_size, hid_size=64):
    """Deterministic f32 init mimicking PyTorch nn.Linear default:
    U(-1/sqrt(fan_in), 1/sqrt(fan_in)) for weight and bias; weights stored [in, out]."""
    def linear_init(k, fan_in, fan_out):
        kw, kb = jax.random.split(k)
        bound = 1.0 / np.sqrt(fan_in)
        w = jax.random.uniform(kw, (fan_in, fan_out), jnp.float32, -bound, bound)
        b = jax.random.uniform(kb, (1, fan_out), jnp.float32, -bound, bound)
        return w, b

    k1, k2, k3 = jax.random.split(key, 3)
    w1, b1 = linear_init(k1, obs_size, hid_size)
    w2, b2 = linear_init(k2, hid_size, hid_size)
    w3, b3 = linear_init(k3, hid_size, act_size)
    return {"w1": w1, "b1": b1, "w2": w2, "b2": b2, "w3": w3, "b3": b3}


def prepare_params(params_f32, use_bf16=True):
    """One-time conversion to the kernel-ready layout/dtype (hoisted out of the forward):
    weights -> bf16 matmul operands, biases -> f32 for the f32 epilogue."""
    wdt = jnp.bfloat16 if use_bf16 else jnp.float32
    return {
        "w1": params_f32["w1"].astype(wdt), "b1": params_f32["b1"].astype(jnp.float32),
        "w2": params_f32["w2"].astype(wdt), "b2": params_f32["b2"].astype(jnp.float32),
        "w3": params_f32["w3"].astype(wdt), "b3": params_f32["b3"].astype(jnp.float32),
    }


def net_forward_ref_f32(x, p):
    h = jnp.tanh(x @ p["w1"] + p["b1"])
    h = jnp.tanh(h @ p["w2"] + p["b2"])
    return jnp.tanh(h @ p["w3"] + p["b3"])


if __name__ == "__main__":
    obs_size, act_size, hid_size = 16, 8, 64

    key = jax.random.PRNGKey(0)
    kx, kp = jax.random.split(key)
    params_f32 = init_params(kp, obs_size, act_size, hid_size)
    params = prepare_params(params_f32, use_bf16=True)

    # Tiny batch: single full-batch block (grid = 1).
    x_small = jax.random.normal(kx, (8, obs_size), jnp.float32)
    out_small = jax.block_until_ready(net_forward(x_small, params))
    ref_small = net_forward_ref_f32(x_small, params_f32)
    np.testing.assert_allclose(
        np.asarray(out_small), np.asarray(ref_small), rtol=5e-2, atol=3e-2
    )

    # Larger batch: 2 grid steps of 512 rows (exercises the pipelined / parallel path).
    x_big = jax.random.normal(kx, (1024, obs_size), jnp.float32)
    out_big = jax.block_until_ready(net_forward(x_big, params))
    ref_big = net_forward_ref_f32(x_big, params_f32)
    np.testing.assert_allclose(
        np.asarray(out_big), np.asarray(ref_big), rtol=5e-2, atol=3e-2
    )

    print("KERNEL_OK")
</pallas_src>

<mosaic_0001>
module attributes {stable_mosaic.version = 11 : i64} {
  func.func @mlp_kernel(%arg0: i32, %arg1: memref<8x16xf32, #tpu.memory_space<vmem>>, %arg2: memref<16x64xbf16, #tpu.memory_space<vmem>>, %arg3: memref<1x64xf32, #tpu.memory_space<vmem>>, %arg4: memref<64x64xbf16, #tpu.memory_space<vmem>>, %arg5: memref<1x64xf32, #tpu.memory_space<vmem>>, %arg6: memref<64x8xbf16, #tpu.memory_space<vmem>>, %arg7: memref<1x8xf32, #tpu.memory_space<vmem>>, %arg8: memref<8x8xf32, #tpu.memory_space<vmem>>) attributes {dimension_semantics = [#tpu.dimension_semantics<parallel>], iteration_bounds = array<i64: 1>, scalar_prefetch = 0 : i64, scratch_operands = 0 : i64, tpu.core_type = #tpu.core_type<tc>, window_params = [{transform_indices = @transform_0, window_bounds = array<i64: 8, 16>}, {pipeline_mode = #tpu.pipeline_mode<synchronous>, transform_indices = @transform_1, window_bounds = array<i64: 16, 64>}, {pipeline_mode = #tpu.pipeline_mode<synchronous>, transform_indices = @transform_2, window_bounds = array<i64: 1, 64>}, {pipeline_mode = #tpu.pipeline_mode<synchronous>, transform_indices = @transform_3, window_bounds = array<i64: 64, 64>}, {pipeline_mode = #tpu.pipeline_mode<synchronous>, transform_indices = @transform_4, window_bounds = array<i64: 1, 64>}, {pipeline_mode = #tpu.pipeline_mode<synchronous>, transform_indices = @transform_5, window_bounds = array<i64: 64, 8>}, {pipeline_mode = #tpu.pipeline_mode<synchronous>, transform_indices = @transform_6, window_bounds = array<i64: 1, 8>}, {transform_indices = @transform_7, window_bounds = array<i64: 8, 8>}]} {
    %c0 = arith.constant 0 : index
    %c0_0 = arith.constant 0 : index
    %0 = vector.load %arg1[%c0, %c0_0] : memref<8x16xf32, #tpu.memory_space<vmem>>, vector<8x16xf32>
    %1 = arith.truncf %0 : vector<8x16xf32> to vector<8x16xbf16>
    %c0_1 = arith.constant 0 : index
    %c0_2 = arith.constant 0 : index
    %2 = vector.load %arg2[%c0_1, %c0_2] : memref<16x64xbf16, #tpu.memory_space<vmem>>, vector<16x64xbf16>
    %cst = arith.constant dense<0.000000e+00> : vector<8x64xf32>
    %3 = tpu.matmul %1, %2, %cst {dimension_numbers = #tpu.dot_dimension_numbers<[1], [0], [0], [1], [0, 0, 1, 1], [], []>} : vector<8x16xbf16>, vector<16x64xbf16>, vector<8x64xf32> -> vector<8x64xf32>
    %c0_3 = arith.constant 0 : index
    %c0_4 = arith.constant 0 : index
    %4 = vector.load %arg3[%c0_3, %c0_4] : memref<1x64xf32, #tpu.memory_space<vmem>>, vector<1x64xf32>
    %5 = vector.broadcast %4 : vector<1x64xf32> to vector<8x64xf32>
    %6 = arith.addf %3, %5 : vector<8x64xf32>
    %7 = math.tanh %6 : vector<8x64xf32>
    %8 = arith.truncf %7 : vector<8x64xf32> to vector<8x64xbf16>
    %c0_5 = arith.constant 0 : index
    %c0_6 = arith.constant 0 : index
    %9 = vector.load %arg4[%c0_5, %c0_6] : memref<64x64xbf16, #tpu.memory_space<vmem>>, vector<64x64xbf16>
    %cst_7 = arith.constant dense<0.000000e+00> : vector<8x64xf32>
    %10 = tpu.matmul %8, %9, %cst_7 {dimension_numbers = #tpu.dot_dimension_numbers<[1], [0], [0], [1], [0, 0, 1, 1], [], []>} : vector<8x64xbf16>, vector<64x64xbf16>, vector<8x64xf32> -> vector<8x64xf32>
    %c0_8 = arith.constant 0 : index
    %c0_9 = arith.constant 0 : index
    %11 = vector.load %arg5[%c0_8, %c0_9] : memref<1x64xf32, #tpu.memory_space<vmem>>, vector<1x64xf32>
    %12 = vector.broadcast %11 : vector<1x64xf32> to vector<8x64xf32>
    %13 = arith.addf %10, %12 : vector<8x64xf32>
    %14 = math.tanh %13 : vector<8x64xf32>
    %15 = arith.truncf %14 : vector<8x64xf32> to vector<8x64xbf16>
    %c0_10 = arith.constant 0 : index
    %c0_11 = arith.constant 0 : index
    %16 = vector.load %arg6[%c0_10, %c0_11] : memref<64x8xbf16, #tpu.memory_space<vmem>>, vector<64x8xbf16>
    %cst_12 = arith.constant dense<0.000000e+00> : vector<8x8xf32>
    %17 = tpu.matmul %15, %16, %cst_12 {dimension_numbers = #tpu.dot_dimension_numbers<[1], [0], [0], [1], [0, 0, 1, 1], [], []>} : vector<8x64xbf16>, vector<64x8xbf16>, vector<8x8xf32> -> vector<8x8xf32>
    %c0_13 = arith.constant 0 : index
    %c0_14 = arith.constant 0 : index
    %18 = vector.load %arg7[%c0_13, %c0_14] : memref<1x8xf32, #tpu.memory_space<vmem>>, vector<1x8xf32>
    %19 = vector.broadcast %18 : vector<1x8xf32> to vector<8x8xf32>
    %20 = arith.addf %17, %19 : vector<8x8xf32>
    %21 = math.tanh %20 : vector<8x8xf32>
    %c0_15 = arith.constant 0 : index
    %c0_16 = arith.constant 0 : index
    %22 = vector.load %arg8[%c0_15, %c0_16] : memref<8x8xf32, #tpu.memory_space<vmem>>, vector<8x8xf32>
    tpu.vector_store %arg8[%c0_15, %c0_16], %21 {strides = array<i32>} : memref<8x8xf32, #tpu.memory_space<vmem>>, vector<8x8xf32>,
    return
  }
  func.func @transform_0(%arg0: i32) -> (i32, i32) {
    %c0_i32 = arith.constant 0 : i32
    %c0_i32_0 = arith.constant 0 : i32
    return %arg0, %c0_i32 : i32, i32
  }
  func.func @transform_1(%arg0: i32) -> (i32, i32) {
    %c0_i32 = arith.constant 0 : i32
    %c0_i32_0 = arith.constant 0 : i32
    %c0_i32_1 = arith.constant 0 : i32
    return %c0_i32, %c0_i32_0 : i32, i32
  }
  func.func @transform_2(%arg0: i32) -> (i32, i32) {
    %c0_i32 = arith.constant 0 : i32
    %c0_i32_0 = arith.constant 0 : i32
    %c0_i32_1 = arith.constant 0 : i32
    return %c0_i32, %c0_i32_0 : i32, i32
  }
  func.func @transform_3(%arg0: i32) -> (i32, i32) {
    %c0_i32 = arith.constant 0 : i32
    %c0_i32_0 = arith.constant 0 : i32
    %c0_i32_1 = arith.constant 0 : i32
    return %c0_i32, %c0_i32_0 : i32, i32
  }
  func.func @transform_4(%arg0: i32) -> (i32, i32) {
    %c0_i32 = arith.constant 0 : i32
    %c0_i32_0 = arith.constant 0 : i32
    %c0_i32_1 = arith.constant 0 : i32
    return %c0_i32, %c0_i32_0 : i32, i32
  }
  func.func @transform_5(%arg0: i32) -> (i32, i32) {
    %c0_i32 = arith.constant 0 : i32
    %c0_i32_0 = arith.constant 0 : i32
    %c0_i32_1 = arith.constant 0 : i32
    return %c0_i32, %c0_i32_0 : i32, i32
  }
  func.func @transform_6(%arg0: i32) -> (i32, i32) {
    %c0_i32 = arith.constant 0 : i32
    %c0_i32_0 = arith.constant 0 : i32
    %c0_i32_1 = arith.constant 0 : i32
    return %c0_i32, %c0_i32_0 : i32, i32
  }
  func.func @transform_7(%arg0: i32) -> (i32, i32) {
    %c0_i32 = arith.constant 0 : i32
    %c0_i32_0 = arith.constant 0 : i32
    return %arg0, %c0_i32 : i32, i32
  }
}

</mosaic_0001>

<llo_original>
// kernel: net_forward.1
$region0: #{net_forward.1}
  #allocation0 [shape = 'u32[]', space=smem, size = 0x4, offset = 0x4, fixed_abs, tag = 'smem constant byte address 0x4 - core index']
  #allocation1 [shape = 'u32[144,128]{1,0:T(1,128)}', space=vmem, size = 0x12000, scoped, tag = 'internal scratch']
  %s0 = inlined_call_operand.vmem [shape: f32[8,16], index: 0, kind: input, shape index: {}]
  %s1 = inlined_call_operand.hbm [shape: bf16[16,64], index: 1, kind: input, shape index: {}]
  %s2 = inlined_call_operand.vmem [shape: f32[1,64], index: 2, kind: input, shape index: {}]
  %s3 = inlined_call_operand.vmem [shape: bf16[64,64], index: 3, kind: input, shape index: {}]
  %s4 = inlined_call_operand.vmem [shape: f32[1,64], index: 4, kind: input, shape index: {}]
  %s5 = inlined_call_operand.vmem [shape: bf16[64,8], index: 5, kind: input, shape index: {}]
  %s6 = inlined_call_operand.hbm [shape: f32[1,8], index: 6, kind: input, shape index: {}]
  %s7 = inlined_call_operand.hbm [shape: f32[8,8], index: 7, kind: output, shape index: {}]
  %s8 = sld [smem:[#allocation0]]
  $region46: #{net_forward.1} parent=0
    _
  %s10 = ssub.s32 1, %s8
  %s11 = scalar_select 0, %s10, %s8
  $region1: #{net_forward.1} parent=0
    #allocation2 [shape = 'u8[4096]{0}', space=vmem, size = 0x1000, scoped, tag = 'input window, operand 1, single buffered']
    #allocation3 [shape = 's32[1]{0}', space=sflag, size = 0x4, scoped, tag = 'scoped memory for net_forward.1']
    #allocation4 [shape = 's32[1]{0}', space=sflag, size = 0x4, scoped, tag = 'scoped memory for net_forward.1']
    #allocation5 [shape = 'u8[512]{0}', space=vmem, size = 0x400, scoped, tag = 'input window, operand 6, single buffered']
    #allocation6 [shape = 's32[1]{0}', space=sflag, size = 0x4, scoped, tag = 'scoped memory for net_forward.1']
    #allocation7 [shape = 'u8[4096]{0}', space=vmem, size = 0x1000, scoped, tag = 'output window, operand 0, single buffered']
    %12 = vsyncpa [#allocation3], 0
    %13 = vsyncpa [#allocation6], 0
    %14 = vsyncpa [#allocation4], 0
    // Predicated region
    $region2: #{net_forward.1} parent=1 // pred_check
      _
    $region3: #{net_forward.1} parent=1 // pred_check_branch
      %16 = sbr.rel (0) target = $region5
    $region4: #{net_forward.1} parent=1 // pred_region
      _
    $region5: #{net_forward.1} parent=1 // pred_fallthru
      _
    // Predicated region
    $region6: #{net_forward.1} parent=1 // pred_check
      _
    $region7: #{net_forward.1} parent=1 // pred_check_branch
      %18 = sbr.rel (0) target = $region9
    $region8: #{net_forward.1} parent=1 // pred_region
      %s20 = ssub.s32 128, 128
      %21 = vsyncadd [#allocation3], %s20
      %s22 = sshll.u32 [#allocation2], 4
      %s23 = int_to_ptr.vmem [resolvable:$true] %s22
      %28 = dma.hbm_to_vmem [thread:$0]  %s1, 128, %s23, [#allocation3], 64, 64, 4
    $region9: #{net_forward.1} parent=1 // pred_fallthru
      _
    // Predicated region
    $region10: #{net_forward.1} parent=1 // pred_check
      _
    $region11: #{net_forward.1} parent=1 // pred_check_branch
      %30 = sbr.rel (0) target = $region13
    $region12: #{net_forward.1} parent=1 // pred_region
      _
    $region13: #{net_forward.1} parent=1 // pred_fallthru
      _
    // Predicated region
    $region14: #{net_forward.1} parent=1 // pred_check
      _
    $region15: #{net_forward.1} parent=1 // pred_check_branch
      %32 = sbr.rel (0) target = $region17
    $region16: #{net_forward.1} parent=1 // pred_region
      _
    $region17: #{net_forward.1} parent=1 // pred_fallthru
      _
    // Predicated region
    $region18: #{net_forward.1} parent=1 // pred_check
      _
    $region19: #{net_forward.1} parent=1 // pred_check_branch
      %34 = sbr.rel (0) target = $region21
    $region20: #{net_forward.1} parent=1 // pred_region
      _
    $region21: #{net_forward.1} parent=1 // pred_fallthru
      _
    // Predicated region
    $region22: #{net_forward.1} parent=1 // pred_check
      _
    $region23: #{net_forward.1} parent=1 // pred_check_branch
      %36 = sbr.rel (0) target = $region25
    $region24: #{net_forward.1} parent=1 // pred_region
      _
    $region25: #{net_forward.1} parent=1 // pred_fallthru
      _
    // Predicated region
    $region26: #{net_forward.1} parent=1 // pred_check
      _
    $region27: #{net_forward.1} parent=1 // pred_check_branch
      %38 = sbr.rel (0) target = $region29
    $region28: #{net_forward.1} parent=1 // pred_region
      %s40 = ssub.s32 16, 16
      %41 = vsyncadd [#allocation6], %s40
      %s43 = sshll.u32 [#allocation5], 4
      %s44 = int_to_ptr.vmem [resolvable:$true] %s43
      %46 = dma.hbm_to_vmem [thread:$0]  %s6, 16, %s44, [#allocation6]
    $region29: #{net_forward.1} parent=1 // pred_fallthru
      _
    // Predicated region
    $region30: #{net_forward.1} parent=1 // pred_check
      _
    $region31: #{net_forward.1} parent=1 // pred_check_branch
      %48 = sbr.rel (0) target = $region33
    $region32: #{net_forward.1} parent=1 // pred_region
      %49 = dma.done [#allocation3], 128
    $region33: #{net_forward.1} parent=1 // pred_fallthru
      _
    // Predicated region
    $region34: #{net_forward.1} parent=1 // pred_check
      _
    $region35: #{net_forward.1} parent=1 // pred_check_branch
      %51 = sbr.rel (0) target = $region37
    $region36: #{net_forward.1} parent=1 // pred_region
      %52 = dma.done [#allocation6], 16
    $region37: #{net_forward.1} parent=1 // pred_fallthru
      _
    %v54 = vld [vmem:[%s0] sm:$0xff]
    %v55 = vpack.c.bf16 %v54, %v54
    %v56 = vld [vmem:[#allocation2] sm:$0xf]
    %v57 = vld [vmem:[#allocation2 + $0x4] sm:$0xf]
    %v58 = vld [vmem:[%s2] sm:$0x1]
    %v60 = vlaneseq
    %v61 = vshrl.u32 %v60, 7
    %v62 = vsub.s32 0, %v61
    %v63 = vrot.slane %v58, %v62
    %v67 = vunpack.c.l.b16 %v56
    %v68 = vunpack.c.l.b16 %v57
    %v69 = vpack.c.b16 %v68, %v67
    %vm71 = vcmask 130048
    %v73 = vsel %vm71, %v55, 0
    %75 = vmatprep.subr.bf16.mxu0 0
    %76 = vmatpush1.bf16.msra.mxu0 0
    %77 = vmatprep.subr.bf16.mxu0 0
    %78 = vmatpush1.bf16.msra.mxu0 0
    %79 = vmatprep.subr.bf16.mxu0 0
    %80 = vmatpush1.bf16.msra.mxu0 0
    %81 = vmatprep.subr.bf16.mxu0 0
    %82 = vmatpush1.bf16.msra.mxu0 0
    %83 = vmatprep.subr.bf16.mxu0 0
    %84 = vmatpush1.bf16.msra.mxu0 0
    %85 = vmatprep.subr.bf16.mxu0 0
    %86 = vmatpush1.bf16.msra.mxu0 0
    %87 = vmatprep.subr.bf16.mxu0 0
    %88 = vmatpush1.bf16.msra.mxu0 0
    %89 = vmatprep.subr.bf16.mxu0 0
    %90 = vmatpush1.bf16.msra.mxu0 %v69
    %91 = vmatprep.subr.bf16.mxu0 0
    %92 = vmatpush2.bf16.msra.mxu0 0
    %93 = vmatprep.subr.bf16.mxu0 0
    %94 = vmatpush2.bf16.msra.mxu0 0
    %95 = vmatprep.subr.bf16.mxu0 0
    %96 = vmatpush2.bf16.msra.mxu0 0
    %97 = vmatprep.subr.bf16.mxu0 0
    %98 = vmatpush2.bf16.msra.mxu0 0
    %99 = vmatprep.subr.bf16.mxu0 0
    %100 = vmatpush2.bf16.msra.mxu0 0
    %101 = vmatprep.subr.bf16.mxu0 0
    %102 = vmatpush2.bf16.msra.mxu0 0
    %103 = vmatprep.subr.bf16.mxu0 0
    %104 = vmatpush2.bf16.msra.mxu0 0
    %105 = vmatprep.subr.bf16.mxu0 0
    %106 = vmatpush2.bf16.msra.mxu0 0
    %107 = vmatprep.mubr.bf16.mxu0 0
    %108 = vmatmul.mubr.bf16.gmra.mxu0 %v73
    %v109 = vpop.f32.mrf.mxu0
    %v110 = vadd.f32 %v63, %v109
    %v111 = vpop.f32.mrf.mxu0
    %v112 = vpop.f32.mrf.mxu0
    %v113 = vpop.f32.mrf.mxu0
    %114 = vdwg.mxu0
    %v115 = vtanh.pop %v110
    %v116 = vpack.c.bf16 %v115, %v115
    %v117 = vld [vmem:[%s3] sm:$0xf]
    %v118 = vld [vmem:[%s3 + $0x4] sm:$0xf]
    %v119 = vld [vmem:[%s3 + $0x8] sm:$0xf]
    %v120 = vld [vmem:[%s3 + $0xc] sm:$0xf]
    %v121 = vld [vmem:[%s3 + $0x10] sm:$0xf]
    %v122 = vld [vmem:[%s3 + $0x14] sm:$0xf]
    %v123 = vld [vmem:[%s3 + $0x18] sm:$0xf]
    %v124 = vld [vmem:[%s3 + $0x1c] sm:$0xf]
    %v125 = vld [vmem:[%s4] sm:$0x1]
    %v127 = vlaneseq
    %v128 = vshrl.u32 %v127, 7
    %v129 = vsub.s32 0, %v128
    %v130 = vrot.slane %v125, %v129
    %v140 = vunpack.c.l.b16 %v117
    %v141 = vunpack.c.l.b16 %v118
    %v142 = vunpack.c.l.b16 %v119
    %v143 = vunpack.c.l.b16 %v120
    %v144 = vunpack.c.l.b16 %v121
    %v145 = vunpack.c.l.b16 %v122
    %v146 = vunpack.c.l.b16 %v123
    %v147 = vunpack.c.l.b16 %v124
    %v148 = vpack.c.b16 %v141, %v140
    %v149 = vpack.c.b16 %v143, %v142
    %v150 = vpack.c.b16 %v145, %v144
    %v151 = vpack.c.b16 %v147, %v146
    %vm156 = vcmask 523264
    %v158 = vsel %vm156, %v116, 0
    %160 = vmatprep.subr.bf16.mxu0 0
    %161 = vmatpush1.bf16.msra.mxu0 0
    %162 = vmatprep.subr.bf16.mxu0 0
    %163 = vmatpush1.bf16.msra.mxu0 0
    %164 = vmatprep.subr.bf16.mxu0 0
    %165 = vmatpush1.bf16.msra.mxu0 0
    %166 = vmatprep.subr.bf16.mxu0 0
    %167 = vmatpush1.bf16.msra.mxu0 0
    %168 = vmatprep.subr.bf16.mxu0 0
    %169 = vmatpush1.bf16.msra.mxu0 %v151
    %170 = vmatprep.subr.bf16.mxu0 0
    %171 = vmatpush1.bf16.msra.mxu0 %v150
    %172 = vmatprep.subr.bf16.mxu0 0
    %173 = vmatpush1.bf16.msra.mxu0 %v149
    %174 = vmatprep.subr.bf16.mxu0 0
    %175 = vmatpush1.bf16.msra.mxu0 %v148
    %176 = vmatprep.subr.bf16.mxu0 0
    %177 = vmatpush2.bf16.msra.mxu0 0
    %178 = vmatprep.subr.bf16.mxu0 0
    %179 = vmatpush2.bf16.msra.mxu0 0
    %180 = vmatprep.subr.bf16.mxu0 0
    %181 = vmatpush2.bf16.msra.mxu0 0
    %182 = vmatprep.subr.bf16.mxu0 0
    %183 = vmatpush2.bf16.msra.mxu0 0
    %184 = vmatprep.subr.bf16.mxu0 0
    %185 = vmatpush2.bf16.msra.mxu0 0
    %186 = vmatprep.subr.bf16.mxu0 0
    %187 = vmatpush2.bf16.msra.mxu0 0
    %188 = vmatprep.subr.bf16.mxu0 0
    %189 = vmatpush2.bf16.msra.mxu0 0
    %190 = vmatprep.subr.bf16.mxu0 0
    %191 = vmatpush2.bf16.msra.mxu0 0
    %192 = vmatprep.mubr.bf16.mxu0 0
    %193 = vmatmul.mubr.bf16.gmra.mxu0 %v158
    %v194 = vpop.f32.mrf.mxu0
    %v195 = vadd.f32 %v130, %v194
    %v196 = vpop.f32.mrf.mxu0
    %v197 = vpop.f32.mrf.mxu0
    %v198 = vpop.f32.mrf.mxu0
    %199 = vdwg.mxu0
    %v200 = vtanh.pop %v195
    %v201 = vpack.c.bf16 %v200, %v200
    %v202 = vld [vmem:[%s5] sm:$0xf]
    %v203 = vld [vmem:[%s5 + $0x4] sm:$0xf]
    %v204 = vld [vmem:[%s5 + $0x8] sm:$0xf]
    %v205 = vld [vmem:[%s5 + $0xc] sm:$0xf]
    %v206 = vld [vmem:[%s5 + $0x10] sm:$0xf]
    %v207 = vld [vmem:[%s5 + $0x14] sm:$0xf]
    %v208 = vld [vmem:[%s5 + $0x18] sm:$0xf]
    %v209 = vld [vmem:[%s5 + $0x1c] sm:$0xf]
    %v210 = vld [vmem:[#allocation5] sm:$0x1]
    %v212 = vlaneseq
    %v213 = vshrl.u32 %v212, 7
    %v214 = vsub.s32 0, %v213
    %v215 = vrot.slane %v210, %v214
    %v225 = vunpack.c.l.b16 %v202
    %v226 = vunpack.c.l.b16 %v203
    %v227 = vunpack.c.l.b16 %v204
    %v228 = vunpack.c.l.b16 %v205
    %v229 = vunpack.c.l.b16 %v206
    %v230 = vunpack.c.l.b16 %v207
    %v231 = vunpack.c.l.b16 %v208
    %v232 = vunpack.c.l.b16 %v209
    %v233 = vpack.c.b16 %v226, %v225
    %v234 = vpack.c.b16 %v228, %v227
    %v235 = vpack.c.b16 %v230, %v229
    %v236 = vpack.c.b16 %v232, %v231
    %v242 = vsel %vm156, %v201, 0
    %244 = vmatprep.subr.bf16.mxu0 0
    %245 = vmatpush1.bf16.msra.mxu0 0
    %246 = vmatprep.subr.bf16.mxu0 0
    %247 = vmatpush1.bf16.msra.mxu0 0
    %248 = vmatprep.subr.bf16.mxu0 0
    %249 = vmatpush1.bf16.msra.mxu0 0
    %250 = vmatprep.subr.bf16.mxu0 0
    %251 = vmatpush1.bf16.msra.mxu0 0
    %252 = vmatprep.subr.bf16.mxu0 0
    %253 = vmatpush1.bf16.msra.mxu0 %v236
    %254 = vmatprep.subr.bf16.mxu0 0
    %255 = vmatpush1.bf16.msra.mxu0 %v235
    %256 = vmatprep.subr.bf16.mxu0 0
    %257 = vmatpush1.bf16.msra.mxu0 %v234
    %258 = vmatprep.subr.bf16.mxu0 0
    %259 = vmatpush1.bf16.msra.mxu0 %v233
    %260 = vmatprep.subr.bf16.mxu0 0
    %261 = vmatpush2.bf16.msra.mxu0 0
    %262 = vmatprep.subr.bf16.mxu0 0
    %263 = vmatpush2.bf16.msra.mxu0 0
    %264 = vmatprep.subr.bf16.mxu0 0
    %265 = vmatpush2.bf16.msra.mxu0 0
    %266 = vmatprep.subr.bf16.mxu0 0
    %267 = vmatpush2.bf16.msra.mxu0 0
    %268 = vmatprep.subr.bf16.mxu0 0
    %269 = vmatpush2.bf16.msra.mxu0 0
    %270 = vmatprep.subr.bf16.mxu0 0
    %271 = vmatpush2.bf16.msra.mxu0 0
    %272 = vmatprep.subr.bf16.mxu0 0
    %273 = vmatpush2.bf16.msra.mxu0 0
    %274 = vmatprep.subr.bf16.mxu0 0
    %275 = vmatpush2.bf16.msra.mxu0 0
    %276 = vmatprep.mubr.bf16.mxu0 0
    %277 = vmatmul.mubr.bf16.gmra.mxu0 %v242
    %v278 = vpop.f32.mrf.mxu0
    %v279 = vadd.f32 %v215, %v278
    %v280 = vpop.f32.mrf.mxu0
    %v281 = vpop.f32.mrf.mxu0
    %v282 = vpop.f32.mrf.mxu0
    %283 = vdwg.mxu0
    %v284 = vtanh.pop %v279
    %vm285 = vcmask 64512
    %286 = vst.msk [vmem:[#allocation7] sm:$0xff] %vm285, %v284
    // Predicated region
    $region38: #{net_forward.1} parent=1 // pred_check
      _
    $region39: #{net_forward.1} parent=1 // pred_check_branch
      %288 = sbr.rel (0) target = $region41
    $region40: #{net_forward.1} parent=1 // pred_region
      %s290 = ssub.s32 128, 128
      %291 = vsyncadd [#allocation4], %s290
      %s293 = sshll.u32 [#allocation7], 4
      %s294 = int_to_ptr.vmem [resolvable:$true] %s293
      %296 = dma.vmem_to_hbm [thread:$0]  %s294, 128, %s7, [#allocation4]
    $region41: #{net_forward.1} parent=1 // pred_fallthru
      _
    // Predicated region
    $region42: #{net_forward.1} parent=1 // pred_check
      _
    $region43: #{net_forward.1} parent=1 // pred_check_branch
      %298 = sbr.rel (0) target = $region45
    $region44: #{net_forward.1} parent=1 // pred_region
      %299 = dma.done [#allocation4], 128
    $region45: #{net_forward.1} parent=1 // pred_fallthru
      _
    %300 = vsyncpa [#allocation3], 1
    %301 = vsyncpa [#allocation6], 1
    %302 = vsyncpa [#allocation4], 1

</llo_original>
